<compile_context>
chip_gen: v7x
topology: tpu7x:2x2x1
jax: 0.10.0
libtpu: 0.0.40
codegen_flags: <defaults>
</compile_context>

<pallas_src>
import functools

import jax
import jax.numpy as jnp
from jax.experimental import pallas as pl
from jax.experimental.pallas import tpu as pltpu


_LANE = 128       # last-dim (lane) alignment
_SUBLANE = 8      # second-to-last dim alignment for f32
_VMEM_BUDGET = 32 * 1024 * 1024   # conservative per-kernel VMEM budget (bytes)
_VMEM_LIMIT = 48 * 1024 * 1024    # scoped-VMEM limit handed to Mosaic


def _round_up(x, m):
    return ((x + m - 1) // m) * m


def _mlp_kernel(*refs, num_layers):
    """Fused MLP forward.

    refs = (x_ref, w0_ref, b0_ref, ..., w{L-1}_ref, b{L-1}_ref, o_ref)
    Weights are pre-transposed [in_p, out_p]; biases are pre-shaped [1, out_p].
    All layers execute in this one body; activations stay on-chip.
    """
    x_ref = refs[0]
    o_ref = refs[-1]
    h = x_ref[...]
    for i in range(num_layers):
        w = refs[1 + 2 * i][...]
        b = refs[2 + 2 * i][...]
        h = jnp.dot(h, w, preferred_element_type=jnp.float32) + b
        if i < num_layers - 1:
            # Sigmoid: exp on the EUP (its own bundle slot), exact divide on
            # the VALU -- keeps the 1e-5 match with the reference.
            h = 1.0 / (1.0 + jnp.exp(-h))
    o_ref[...] = h.astype(o_ref.dtype)


def init_fully_connected_net(key, input_size, hidden_size, num_hidden_layers,
                             embedding_size):
    """Parameter init matching the PyTorch module's shapes.

    Returns a list of (W, b) with W[out, in], b[out] (PyTorch Linear layout),
    using U(-1/sqrt(fan_in), 1/sqrt(fan_in)) like torch.nn.Linear's default.
    """
    assert num_hidden_layers >= 0
    assert hidden_size >= 1
    assert embedding_size >= 1

    if num_hidden_layers == 0:
        dims = [(input_size, embedding_size)]
    else:
        dims = [(input_size, hidden_size)]
        dims += [(hidden_size, hidden_size)] * (num_hidden_layers - 1)
        dims += [(hidden_size, embedding_size)]

    params = []
    for (fan_in, fan_out) in dims:
        key, kw, kb = jax.random.split(key, 3)
        bound = 1.0 / jnp.sqrt(jnp.float32(fan_in))
        w = jax.random.uniform(kw, (fan_out, fan_in), jnp.float32,
                               minval=-bound, maxval=bound)
        b = jax.random.uniform(kb, (fan_out,), jnp.float32,
                               minval=-bound, maxval=bound)
        params.append((w, b))
    return params


def prepare_params(params):
    """One-time prep: transpose W to [in, out] and zero-pad feature dims to 128.

    Biases are pre-shaped to [1, out_p] so no per-forward reshape is needed.
    """
    prepped = []
    for w, b in params:
        out_f, in_f = w.shape
        in_p = _round_up(in_f, _LANE)
        out_p = _round_up(out_f, _LANE)
        w_t = jnp.zeros((in_p, out_p), jnp.float32).at[:in_f, :out_f].set(w.T)
        b_p = jnp.zeros((1, out_p), jnp.float32).at[0, :out_f].set(b)
        prepped.append((w_t, b_p))
    return prepped


def _vmem_estimate(tile_b, in_p, out_p, layer_dims):
    """Rough per-step VMEM footprint (bytes) for a given batch tile."""
    param_bytes = sum(ip * op * 4 + op * 4 for ip, op in layer_dims)
    io_bytes = 2 * tile_b * in_p * 4 + 2 * tile_b * out_p * 4   # double-buffered
    max_dim = max([in_p, out_p] + [op for _, op in layer_dims])
    live_bytes = 2 * tile_b * max_dim * 4                       # live activations
    return param_bytes + io_bytes + live_bytes


def _pick_batch_tile(batch, in_p, out_p, layer_dims):
    if batch < _LANE:
        return _round_up(batch, _SUBLANE)
    for cand in (512, 256, 128):
        if _vmem_estimate(cand, in_p, out_p, layer_dims) <= _VMEM_BUDGET:
            return cand
    return _LANE


def fully_connected_net_forward(prepped_params, x, out_features):
    """Forward pass (sigmoid after every layer except the last), fused kernel."""
    batch, in_features = x.shape
    num_layers = len(prepped_params)
    layer_dims = [(w.shape[0], w.shape[1]) for w, _ in prepped_params]
    in_p = layer_dims[0][0]
    out_p = layer_dims[-1][1]

    tile_b = _pick_batch_tile(batch, in_p, out_p, layer_dims)
    batch_p = _round_up(batch, tile_b)

    x_p = jnp.zeros((batch_p, in_p), jnp.float32).at[:batch, :in_features].set(x)

    flat_inputs = [x_p]
    in_specs = [pl.BlockSpec((tile_b, in_p), lambda i: (i, 0))]
    for w, b in prepped_params:
        flat_inputs += [w, b]
        # Weights/biases: full blocks, constant index_map -> stay resident
        # across batch tiles (no re-DMA per grid step).
        in_specs += [
            pl.BlockSpec(w.shape, lambda i: (0, 0)),
            pl.BlockSpec(b.shape, lambda i: (0, 0)),
        ]

    flops = 2 * batch_p * sum(ip * op for ip, op in layer_dims)
    transcendentals = batch_p * sum(op for _, op in layer_dims[:-1])
    bytes_accessed = (
        x_p.size * 4
        + sum(ip * op * 4 + op * 4 for ip, op in layer_dims)
        + batch_p * out_p * 4)

    kernel = functools.partial(_mlp_kernel, num_layers=num_layers)
    out_padded = pl.pallas_call(
        kernel,
        out_shape=jax.ShapeDtypeStruct((batch_p, out_p), jnp.float32),
        grid=(batch_p // tile_b,),
        in_specs=in_specs,
        out_specs=pl.BlockSpec((tile_b, out_p), lambda i: (i, 0)),
        compiler_params=pltpu.CompilerParams(
            dimension_semantics=("parallel",),
            vmem_limit_bytes=_VMEM_LIMIT),
        cost_estimate=pl.CostEstimate(
            flops=flops,
            transcendentals=transcendentals,
            bytes_accessed=bytes_accessed),
    )(*flat_inputs)

    return out_padded[:batch, :out_features]


def _reference_forward(params, x):
    n = len(params)
    for i, (w, b) in enumerate(params):
        x = x @ w.T + b
        if i < n - 1:
            x = jax.nn.sigmoid(x)
    return x


if __name__ == "__main__":
    key = jax.random.PRNGKey(0)
    key, kx, kp = jax.random.split(key, 3)

    # Small, module-consistent shapes.
    batch = 8
    input_size = 32
    hidden_size = 32
    num_hidden_layers = 2
    embedding_size = 16

    x = jax.random.normal(kx, (batch, input_size), jnp.float32)
    params = init_fully_connected_net(kp, input_size, hidden_size,
                                      num_hidden_layers, embedding_size)
    prepped = prepare_params(params)

    out = fully_connected_net_forward(prepped, x, embedding_size)
    out = jax.block_until_ready(out)

    ref = _reference_forward(params, x)
    assert out.shape == (batch, embedding_size)
    assert jnp.allclose(out, ref, atol=1e-5, rtol=1e-5), (
        float(jnp.max(jnp.abs(out - ref))))

    print("KERNEL_OK")
</pallas_src>

<mosaic_0001>
module attributes {stable_mosaic.version = 11 : i64} {
  func.func @_mlp_kernel(%arg0: i32, %arg1: memref<8x128xf32, #tpu.memory_space<vmem>>, %arg2: memref<128x128xf32, #tpu.memory_space<vmem>>, %arg3: memref<1x128xf32, #tpu.memory_space<vmem>>, %arg4: memref<128x128xf32, #tpu.memory_space<vmem>>, %arg5: memref<1x128xf32, #tpu.memory_space<vmem>>, %arg6: memref<128x128xf32, #tpu.memory_space<vmem>>, %arg7: memref<1x128xf32, #tpu.memory_space<vmem>>, %arg8: memref<8x128xf32, #tpu.memory_space<vmem>>) attributes {dimension_semantics = [#tpu.dimension_semantics<parallel>], iteration_bounds = array<i64: 1>, scalar_prefetch = 0 : i64, scratch_operands = 0 : i64, tpu.core_type = #tpu.core_type<tc>, window_params = [{transform_indices = @transform_0, window_bounds = array<i64: 8, 128>}, {pipeline_mode = #tpu.pipeline_mode<synchronous>, transform_indices = @transform_1, window_bounds = array<i64: 128, 128>}, {pipeline_mode = #tpu.pipeline_mode<synchronous>, transform_indices = @transform_2, window_bounds = array<i64: 1, 128>}, {pipeline_mode = #tpu.pipeline_mode<synchronous>, transform_indices = @transform_3, window_bounds = array<i64: 128, 128>}, {pipeline_mode = #tpu.pipeline_mode<synchronous>, transform_indices = @transform_4, window_bounds = array<i64: 1, 128>}, {pipeline_mode = #tpu.pipeline_mode<synchronous>, transform_indices = @transform_5, window_bounds = array<i64: 128, 128>}, {pipeline_mode = #tpu.pipeline_mode<synchronous>, transform_indices = @transform_6, window_bounds = array<i64: 1, 128>}, {transform_indices = @transform_7, window_bounds = array<i64: 8, 128>}]} {
    %c0 = arith.constant 0 : index
    %c0_0 = arith.constant 0 : index
    %0 = vector.load %arg1[%c0, %c0_0] : memref<8x128xf32, #tpu.memory_space<vmem>>, vector<8x128xf32>
    %c0_1 = arith.constant 0 : index
    %c0_2 = arith.constant 0 : index
    %1 = vector.load %arg2[%c0_1, %c0_2] : memref<128x128xf32, #tpu.memory_space<vmem>>, vector<128x128xf32>
    %c0_3 = arith.constant 0 : index
    %c0_4 = arith.constant 0 : index
    %2 = vector.load %arg3[%c0_3, %c0_4] : memref<1x128xf32, #tpu.memory_space<vmem>>, vector<1x128xf32>
    %cst = arith.constant dense<0.000000e+00> : vector<8x128xf32>
    %3 = tpu.matmul %0, %1, %cst {dimension_numbers = #tpu.dot_dimension_numbers<[1], [0], [0], [1], [0, 0, 1, 1], [], []>} : vector<8x128xf32>, vector<128x128xf32>, vector<8x128xf32> -> vector<8x128xf32>
    %4 = vector.broadcast %2 : vector<1x128xf32> to vector<8x128xf32>
    %5 = arith.addf %3, %4 : vector<8x128xf32>
    %cst_5 = arith.constant 0.000000e+00 : f32
    %6 = vector.broadcast %cst_5 : f32 to vector<8x128xf32>
    %7 = arith.subf %6, %5 : vector<8x128xf32>
    %8 = math.exp %7 : vector<8x128xf32>
    %cst_6 = arith.constant 1.000000e+00 : f32
    %9 = vector.broadcast %cst_6 : f32 to vector<8x128xf32>
    %10 = arith.addf %9, %8 : vector<8x128xf32>
    %cst_7 = arith.constant 1.000000e+00 : f32
    %11 = vector.broadcast %cst_7 : f32 to vector<8x128xf32>
    %12 = arith.divf %11, %10 : vector<8x128xf32>
    %c0_8 = arith.constant 0 : index
    %c0_9 = arith.constant 0 : index
    %13 = vector.load %arg4[%c0_8, %c0_9] : memref<128x128xf32, #tpu.memory_space<vmem>>, vector<128x128xf32>
    %c0_10 = arith.constant 0 : index
    %c0_11 = arith.constant 0 : index
    %14 = vector.load %arg5[%c0_10, %c0_11] : memref<1x128xf32, #tpu.memory_space<vmem>>, vector<1x128xf32>
    %cst_12 = arith.constant dense<0.000000e+00> : vector<8x128xf32>
    %15 = tpu.matmul %12, %13, %cst_12 {dimension_numbers = #tpu.dot_dimension_numbers<[1], [0], [0], [1], [0, 0, 1, 1], [], []>} : vector<8x128xf32>, vector<128x128xf32>, vector<8x128xf32> -> vector<8x128xf32>
    %16 = vector.broadcast %14 : vector<1x128xf32> to vector<8x128xf32>
    %17 = arith.addf %15, %16 : vector<8x128xf32>
    %cst_13 = arith.constant 0.000000e+00 : f32
    %18 = vector.broadcast %cst_13 : f32 to vector<8x128xf32>
    %19 = arith.subf %18, %17 : vector<8x128xf32>
    %20 = math.exp %19 : vector<8x128xf32>
    %cst_14 = arith.constant 1.000000e+00 : f32
    %21 = vector.broadcast %cst_14 : f32 to vector<8x128xf32>
    %22 = arith.addf %21, %20 : vector<8x128xf32>
    %cst_15 = arith.constant 1.000000e+00 : f32
    %23 = vector.broadcast %cst_15 : f32 to vector<8x128xf32>
    %24 = arith.divf %23, %22 : vector<8x128xf32>
    %c0_16 = arith.constant 0 : index
    %c0_17 = arith.constant 0 : index
    %25 = vector.load %arg6[%c0_16, %c0_17] : memref<128x128xf32, #tpu.memory_space<vmem>>, vector<128x128xf32>
    %c0_18 = arith.constant 0 : index
    %c0_19 = arith.constant 0 : index
    %26 = vector.load %arg7[%c0_18, %c0_19] : memref<1x128xf32, #tpu.memory_space<vmem>>, vector<1x128xf32>
    %cst_20 = arith.constant dense<0.000000e+00> : vector<8x128xf32>
    %27 = tpu.matmul %24, %25, %cst_20 {dimension_numbers = #tpu.dot_dimension_numbers<[1], [0], [0], [1], [0, 0, 1, 1], [], []>} : vector<8x128xf32>, vector<128x128xf32>, vector<8x128xf32> -> vector<8x128xf32>
    %28 = vector.broadcast %26 : vector<1x128xf32> to vector<8x128xf32>
    %29 = arith.addf %27, %28 : vector<8x128xf32>
    %c0_21 = arith.constant 0 : index
    %c0_22 = arith.constant 0 : index
    %30 = vector.load %arg8[%c0_21, %c0_22] : memref<8x128xf32, #tpu.memory_space<vmem>>, vector<8x128xf32>
    tpu.vector_store %arg8[%c0_21, %c0_22], %29 {strides = array<i32>} : memref<8x128xf32, #tpu.memory_space<vmem>>, vector<8x128xf32>,
    return
  }
  func.func @transform_0(%arg0: i32) -> (i32, i32) {
    %c0_i32 = arith.constant 0 : i32
    %c0_i32_0 = arith.constant 0 : i32
    return %arg0, %c0_i32 : i32, i32
  }
  func.func @transform_1(%arg0: i32) -> (i32, i32) {
    %c0_i32 = arith.constant 0 : i32
    %c0_i32_0 = arith.constant 0 : i32
    %c0_i32_1 = arith.constant 0 : i32
    return %c0_i32, %c0_i32_0 : i32, i32
  }
  func.func @transform_2(%arg0: i32) -> (i32, i32) {
    %c0_i32 = arith.constant 0 : i32
    %c0_i32_0 = arith.constant 0 : i32
    %c0_i32_1 = arith.constant 0 : i32
    return %c0_i32, %c0_i32_0 : i32, i32
  }
  func.func @transform_3(%arg0: i32) -> (i32, i32) {
    %c0_i32 = arith.constant 0 : i32
    %c0_i32_0 = arith.constant 0 : i32
    %c0_i32_1 = arith.constant 0 : i32
    return %c0_i32, %c0_i32_0 : i32, i32
  }
  func.func @transform_4(%arg0: i32) -> (i32, i32) {
    %c0_i32 = arith.constant 0 : i32
    %c0_i32_0 = arith.constant 0 : i32
    %c0_i32_1 = arith.constant 0 : i32
    return %c0_i32, %c0_i32_0 : i32, i32
  }
  func.func @transform_5(%arg0: i32) -> (i32, i32) {
    %c0_i32 = arith.constant 0 : i32
    %c0_i32_0 = arith.constant 0 : i32
    %c0_i32_1 = arith.constant 0 : i32
    return %c0_i32, %c0_i32_0 : i32, i32
  }
  func.func @transform_6(%arg0: i32) -> (i32, i32) {
    %c0_i32 = arith.constant 0 : i32
    %c0_i32_0 = arith.constant 0 : i32
    %c0_i32_1 = arith.constant 0 : i32
    return %c0_i32, %c0_i32_0 : i32, i32
  }
  func.func @transform_7(%arg0: i32) -> (i32, i32) {
    %c0_i32 = arith.constant 0 : i32
    %c0_i32_0 = arith.constant 0 : i32
    return %arg0, %c0_i32 : i32, i32
  }
}

</mosaic_0001>

<llo_original>
// kernel: tpu_custom_call.1
$region0: #{tpu_custom_call.1}
  #allocation0 [shape = 'u32[]', space=smem, size = 0x4, offset = 0x4, fixed_abs, tag = 'smem constant byte address 0x4 - core index']
  #allocation1 [shape = 'u32[144,128]{1,0:T(1,128)}', space=vmem, size = 0x12000, scoped, tag = 'internal scratch']
  %s0 = inlined_call_operand.hbm [shape: f32[8,128], index: 0, kind: input, shape index: {}]
  %s1 = inlined_call_operand.hbm [shape: f32[128,128], index: 1, kind: input, shape index: {}]
  %s2 = inlined_call_operand.vmem [shape: f32[1,128], index: 2, kind: input, shape index: {}]
  %s3 = inlined_call_operand.hbm [shape: f32[128,128], index: 3, kind: input, shape index: {}]
  %s4 = inlined_call_operand.vmem [shape: f32[1,128], index: 4, kind: input, shape index: {}]
  %s5 = inlined_call_operand.hbm [shape: f32[128,128], index: 5, kind: input, shape index: {}]
  %s6 = inlined_call_operand.vmem [shape: f32[1,128], index: 6, kind: input, shape index: {}]
  %s7 = inlined_call_operand.hbm [shape: f32[8,128], index: 7, kind: output, shape index: {}]
  %s8 = sld [smem:[#allocation0]]
  $region54: #{tpu_custom_call.1} parent=0
    _
  %s10 = ssub.s32 1, %s8
  %s11 = scalar_select 0, %s10, %s8
  $region1: #{tpu_custom_call.1} parent=0
    #allocation2 [shape = 'u8[4096]{0}', space=vmem, size = 0x1000, scoped, tag = 'input window, operand 0, single buffered']
    #allocation3 [shape = 's32[1]{0}', space=sflag, size = 0x4, scoped, tag = 'scoped memory for tpu_custom_call.1']
    #allocation4 [shape = 's32[1]{0}', space=sflag, size = 0x4, scoped, tag = 'scoped memory for tpu_custom_call.1']
    #allocation5 [shape = 'u8[65536]{0}', space=vmem, size = 0x10000, scoped, tag = 'input window, operand 1, single buffered']
    #allocation6 [shape = 's32[1]{0}', space=sflag, size = 0x4, scoped, tag = 'scoped memory for tpu_custom_call.1']
    #allocation7 [shape = 'u8[65536]{0}', space=vmem, size = 0x10000, scoped, tag = 'input window, operand 3, single buffered']
    #allocation8 [shape = 'u8[65536]{0}', space=vmem, size = 0x10000, scoped, tag = 'input window, operand 5, single buffered']
    #allocation9 [shape = 's32[1]{0}', space=sflag, size = 0x4, scoped, tag = 'scoped memory for tpu_custom_call.1']
    #allocation10 [shape = 'u8[4096]{0}', space=vmem, size = 0x1000, scoped, tag = 'output window, operand 0, single buffered']
    %12 = vsyncpa [#allocation3], 0
    %13 = vsyncpa [#allocation6], 0
    %14 = vsyncpa [#allocation9], 0
    %15 = vsyncpa [#allocation4], 0
    // Predicated region
    $region2: #{tpu_custom_call.1} parent=1 // pred_check
      _
    $region3: #{tpu_custom_call.1} parent=1 // pred_check_branch
      %17 = sbr.rel (0) target = $region5
    $region4: #{tpu_custom_call.1} parent=1 // pred_region
      %s19 = ssub.s32 128, 128
      %20 = vsyncadd [#allocation3], %s19
      %s22 = sshll.u32 [#allocation2], 4
      %s23 = int_to_ptr.vmem [resolvable:$true] %s22
      %25 = dma.hbm_to_vmem [thread:$0]  %s0, 128, %s23, [#allocation3]
    $region5: #{tpu_custom_call.1} parent=1 // pred_fallthru
      _
    // Predicated region
    $region6: #{tpu_custom_call.1} parent=1 // pred_check
      _
    $region7: #{tpu_custom_call.1} parent=1 // pred_check_branch
      %27 = sbr.rel (0) target = $region9
    $region8: #{tpu_custom_call.1} parent=1 // pred_region
      %s29 = ssub.s32 2048, 2048
      %30 = vsyncadd [#allocation6], %s29
      %s31 = sshll.u32 [#allocation5], 4
      %s32 = int_to_ptr.vmem [resolvable:$true] %s31
      %37 = dma.hbm_to_vmem [thread:$0]  %s1, 2048, %s32, [#allocation6], 128, 128, 8
    $region9: #{tpu_custom_call.1} parent=1 // pred_fallthru
      _
    // Predicated region
    $region10: #{tpu_custom_call.1} parent=1 // pred_check
      _
    $region11: #{tpu_custom_call.1} parent=1 // pred_check_branch
      %39 = sbr.rel (0) target = $region13
    $region12: #{tpu_custom_call.1} parent=1 // pred_region
      _
    $region13: #{tpu_custom_call.1} parent=1 // pred_fallthru
      _
    // Predicated region
    $region14: #{tpu_custom_call.1} parent=1 // pred_check
      _
    $region15: #{tpu_custom_call.1} parent=1 // pred_check_branch
      %41 = sbr.rel (0) target = $region17
    $region16: #{tpu_custom_call.1} parent=1 // pred_region
      %s43 = ssub.s32 2048, 2048
      %44 = vsyncadd [#allocation6], %s43
      %s45 = sshll.u32 [#allocation7], 4
      %s46 = int_to_ptr.vmem [resolvable:$true] %s45
      %51 = dma.hbm_to_vmem [thread:$0]  %s3, 2048, %s46, [#allocation6], 128, 128, 8
    $region17: #{tpu_custom_call.1} parent=1 // pred_fallthru
      _
    // Predicated region
    $region18: #{tpu_custom_call.1} parent=1 // pred_check
      _
    $region19: #{tpu_custom_call.1} parent=1 // pred_check_branch
      %53 = sbr.rel (0) target = $region21
    $region20: #{tpu_custom_call.1} parent=1 // pred_region
      _
    $region21: #{tpu_custom_call.1} parent=1 // pred_fallthru
      _
    // Predicated region
    $region22: #{tpu_custom_call.1} parent=1 // pred_check
      _
    $region23: #{tpu_custom_call.1} parent=1 // pred_check_branch
      %55 = sbr.rel (0) target = $region25
    $region24: #{tpu_custom_call.1} parent=1 // pred_region
      %s57 = ssub.s32 2048, 2048
      %58 = vsyncadd [#allocation9], %s57
      %s59 = sshll.u32 [#allocation8], 4
      %s60 = int_to_ptr.vmem [resolvable:$true] %s59
      %65 = dma.hbm_to_vmem [thread:$0]  %s5, 2048, %s60, [#allocation9], 128, 128, 8
    $region25: #{tpu_custom_call.1} parent=1 // pred_fallthru
      _
    // Predicated region
    $region26: #{tpu_custom_call.1} parent=1 // pred_check
      _
    $region27: #{tpu_custom_call.1} parent=1 // pred_check_branch
      %67 = sbr.rel (0) target = $region29
    $region28: #{tpu_custom_call.1} parent=1 // pred_region
      _
    $region29: #{tpu_custom_call.1} parent=1 // pred_fallthru
      _
    // Predicated region
    $region30: #{tpu_custom_call.1} parent=1 // pred_check
      _
    $region31: #{tpu_custom_call.1} parent=1 // pred_check_branch
      %69 = sbr.rel (0) target = $region33
    $region32: #{tpu_custom_call.1} parent=1 // pred_region
      %70 = dma.done [#allocation3], 128
    $region33: #{tpu_custom_call.1} parent=1 // pred_fallthru
      _
    // Predicated region
    $region34: #{tpu_custom_call.1} parent=1 // pred_check
      _
    $region35: #{tpu_custom_call.1} parent=1 // pred_check_branch
      %72 = sbr.rel (0) target = $region37
    $region36: #{tpu_custom_call.1} parent=1 // pred_region
      %73 = dma.done [#allocation6], 2048
    $region37: #{tpu_custom_call.1} parent=1 // pred_fallthru
      _
    // Predicated region
    $region38: #{tpu_custom_call.1} parent=1 // pred_check
      _
    $region39: #{tpu_custom_call.1} parent=1 // pred_check_branch
      %75 = sbr.rel (0) target = $region41
    $region40: #{tpu_custom_call.1} parent=1 // pred_region
      %76 = dma.done [#allocation6], 2048
    $region41: #{tpu_custom_call.1} parent=1 // pred_fallthru
      _
    // Predicated region
    $region42: #{tpu_custom_call.1} parent=1 // pred_check
      _
    $region43: #{tpu_custom_call.1} parent=1 // pred_check_branch
      %78 = sbr.rel (0) target = $region45
    $region44: #{tpu_custom_call.1} parent=1 // pred_region
      %79 = dma.done [#allocation9], 2048
    $region45: #{tpu_custom_call.1} parent=1 // pred_fallthru
      _
    %v80 = vld [vmem:[#allocation2] sm:$0xff]
    %v81 = vld [vmem:[#allocation5] sm:$0xff]
    %v82 = vld [vmem:[#allocation5 + $0x8] sm:$0xff]
    %v83 = vld [vmem:[#allocation5 + $0x10] sm:$0xff]
    %v84 = vld [vmem:[#allocation5 + $0x18] sm:$0xff]
    %v85 = vld [vmem:[#allocation5 + $0x20] sm:$0xff]
    %v86 = vld [vmem:[#allocation5 + $0x28] sm:$0xff]
    %v87 = vld [vmem:[#allocation5 + $0x30] sm:$0xff]
    %v88 = vld [vmem:[#allocation5 + $0x38] sm:$0xff]
    %v89 = vld [vmem:[#allocation5 + $0x40] sm:$0xff]
    %v90 = vld [vmem:[#allocation5 + $0x48] sm:$0xff]
    %v91 = vld [vmem:[#allocation5 + $0x50] sm:$0xff]
    %v92 = vld [vmem:[#allocation5 + $0x58] sm:$0xff]
    %v93 = vld [vmem:[#allocation5 + $0x60] sm:$0xff]
    %v94 = vld [vmem:[#allocation5 + $0x68] sm:$0xff]
    %v95 = vld [vmem:[#allocation5 + $0x70] sm:$0xff]
    %v96 = vld [vmem:[#allocation5 + $0x78] sm:$0xff]
    %v97 = vld [vmem:[%s2] sm:$0x1]
    %v99 = vlaneseq
    %v100 = vshrl.u32 %v99, 7
    %v101 = vsub.s32 0, %v100
    %v102 = vrot.slane %v97, %v101
    %104 = vmatprep.subr.mxu0 0.0
    %105 = vmatpush1.msra.mxu0 %v81
    %106 = vmatprep.subr.mxu0 0.0
    %107 = vmatpush1.msra.mxu0 %v82
    %108 = vmatprep.subr.mxu0 0.0
    %109 = vmatpush1.msra.mxu0 %v83
    %110 = vmatprep.subr.mxu0 0.0
    %111 = vmatpush1.msra.mxu0 %v84
    %112 = vmatprep.subr.mxu0 0.0
    %113 = vmatpush1.msra.mxu0 %v85
    %114 = vmatprep.subr.mxu0 0.0
    %115 = vmatpush1.msra.mxu0 %v86
    %116 = vmatprep.subr.mxu0 0.0
    %117 = vmatpush1.msra.mxu0 %v87
    %118 = vmatprep.subr.mxu0 0.0
    %119 = vmatpush1.msra.mxu0 %v88
    %120 = vmatprep.subr.mxu0 0.0
    %121 = vmatpush1.msra.mxu0 %v89
    %122 = vmatprep.subr.mxu0 0.0
    %123 = vmatpush1.msra.mxu0 %v90
    %124 = vmatprep.subr.mxu0 0.0
    %125 = vmatpush1.msra.mxu0 %v91
    %126 = vmatprep.subr.mxu0 0.0
    %127 = vmatpush1.msra.mxu0 %v92
    %128 = vmatprep.subr.mxu0 0.0
    %129 = vmatpush1.msra.mxu0 %v93
    %130 = vmatprep.subr.mxu0 0.0
    %131 = vmatpush1.msra.mxu0 %v94
    %132 = vmatprep.subr.mxu0 0.0
    %133 = vmatpush1.msra.mxu0 %v95
    %134 = vmatprep.subr.mxu0 0.0
    %135 = vmatpush1.msra.mxu0 %v96
    %136 = vmatprep.subr.mxu0 0.0
    %137 = vmatpush1.msra.mxu0 0.0
    %138 = vmatprep.subr.mxu0 0.0
    %139 = vmatpush1.msra.mxu0 0.0
    %140 = vmatprep.subr.mxu0 0.0
    %141 = vmatpush1.msra.mxu0 0.0
    %142 = vmatprep.subr.mxu0 0.0
    %143 = vmatpush1.msra.mxu0 0.0
    %144 = vmatprep.subr.mxu0 0.0
    %145 = vmatpush1.msra.mxu0 0.0
    %146 = vmatprep.subr.mxu0 0.0
    %147 = vmatpush1.msra.mxu0 0.0
    %148 = vmatprep.subr.mxu0 0.0
    %149 = vmatpush1.msra.mxu0 0.0
    %150 = vmatprep.subr.mxu0 0.0
    %151 = vmatpush1.msra.mxu0 0.0
    %152 = vmatprep.subr.mxu0 0.0
    %153 = vmatpush1.msra.mxu0 0.0
    %154 = vmatprep.subr.mxu0 0.0
    %155 = vmatpush1.msra.mxu0 0.0
    %156 = vmatprep.subr.mxu0 0.0
    %157 = vmatpush1.msra.mxu0 0.0
    %158 = vmatprep.subr.mxu0 0.0
    %159 = vmatpush1.msra.mxu0 0.0
    %160 = vmatprep.subr.mxu0 0.0
    %161 = vmatpush1.msra.mxu0 0.0
    %162 = vmatprep.subr.mxu0 0.0
    %163 = vmatpush1.msra.mxu0 0.0
    %164 = vmatprep.subr.mxu0 0.0
    %165 = vmatpush1.msra.mxu0 0.0
    %166 = vmatprep.subr.mxu0 0.0
    %167 = vmatpush1.msra.mxu0 0.0
    %168 = vmatprep.mubr.f32.mxu0 0.0
    %169 = vmatmul.mubr.f32.gmra.mrb[0].mxu0 %v80
    %v170 = vpop.f32.mrb[0].mxu0
    %v171 = vadd.f32 %v102, %v170
    %v172 = vpop.f32.mrb[0].mxu0
    %173 = vdwg.mxu0
    %v174 = vsub.f32 0.0, %v171
    %v175 = vmul.f32 %v174, 1.442695
    %v176 = vpow.pop %v175
    %v177 = vadd.f32 %v176, 1.0
    %v178 = vrcp.pop %v177
    %v179 = vmul.f32 1.0, %v178
    %v180 = vld [vmem:[#allocation7] sm:$0xff]
    %v181 = vld [vmem:[#allocation7 + $0x8] sm:$0xff]
    %v182 = vld [vmem:[#allocation7 + $0x10] sm:$0xff]
    %v183 = vld [vmem:[#allocation7 + $0x18] sm:$0xff]
    %v184 = vld [vmem:[#allocation7 + $0x20] sm:$0xff]
    %v185 = vld [vmem:[#allocation7 + $0x28] sm:$0xff]
    %v186 = vld [vmem:[#allocation7 + $0x30] sm:$0xff]
    %v187 = vld [vmem:[#allocation7 + $0x38] sm:$0xff]
    %v188 = vld [vmem:[#allocation7 + $0x40] sm:$0xff]
    %v189 = vld [vmem:[#allocation7 + $0x48] sm:$0xff]
    %v190 = vld [vmem:[#allocation7 + $0x50] sm:$0xff]
    %v191 = vld [vmem:[#allocation7 + $0x58] sm:$0xff]
    %v192 = vld [vmem:[#allocation7 + $0x60] sm:$0xff]
    %v193 = vld [vmem:[#allocation7 + $0x68] sm:$0xff]
    %v194 = vld [vmem:[#allocation7 + $0x70] sm:$0xff]
    %v195 = vld [vmem:[#allocation7 + $0x78] sm:$0xff]
    %v196 = vld [vmem:[%s4] sm:$0x1]
    %v198 = vlaneseq
    %v199 = vshrl.u32 %v198, 7
    %v200 = vsub.s32 0, %v199
    %v201 = vrot.slane %v196, %v200
    %203 = vmatprep.subr.mxu0 0.0
    %204 = vmatpush1.msra.mxu0 %v180
    %205 = vmatprep.subr.mxu0 0.0
    %206 = vmatpush1.msra.mxu0 %v181
    %207 = vmatprep.subr.mxu0 0.0
    %208 = vmatpush1.msra.mxu0 %v182
    %209 = vmatprep.subr.mxu0 0.0
    %210 = vmatpush1.msra.mxu0 %v183
    %211 = vmatprep.subr.mxu0 0.0
    %212 = vmatpush1.msra.mxu0 %v184
    %213 = vmatprep.subr.mxu0 0.0
    %214 = vmatpush1.msra.mxu0 %v185
    %215 = vmatprep.subr.mxu0 0.0
    %216 = vmatpush1.msra.mxu0 %v186
    %217 = vmatprep.subr.mxu0 0.0
    %218 = vmatpush1.msra.mxu0 %v187
    %219 = vmatprep.subr.mxu0 0.0
    %220 = vmatpush1.msra.mxu0 %v188
    %221 = vmatprep.subr.mxu0 0.0
    %222 = vmatpush1.msra.mxu0 %v189
    %223 = vmatprep.subr.mxu0 0.0
    %224 = vmatpush1.msra.mxu0 %v190
    %225 = vmatprep.subr.mxu0 0.0
    %226 = vmatpush1.msra.mxu0 %v191
    %227 = vmatprep.subr.mxu0 0.0
    %228 = vmatpush1.msra.mxu0 %v192
    %229 = vmatprep.subr.mxu0 0.0
    %230 = vmatpush1.msra.mxu0 %v193
    %231 = vmatprep.subr.mxu0 0.0
    %232 = vmatpush1.msra.mxu0 %v194
    %233 = vmatprep.subr.mxu0 0.0
    %234 = vmatpush1.msra.mxu0 %v195
    %235 = vmatprep.subr.mxu0 0.0
    %236 = vmatpush1.msra.mxu0 0.0
    %237 = vmatprep.subr.mxu0 0.0
    %238 = vmatpush1.msra.mxu0 0.0
    %239 = vmatprep.subr.mxu0 0.0
    %240 = vmatpush1.msra.mxu0 0.0
    %241 = vmatprep.subr.mxu0 0.0
    %242 = vmatpush1.msra.mxu0 0.0
    %243 = vmatprep.subr.mxu0 0.0
    %244 = vmatpush1.msra.mxu0 0.0
    %245 = vmatprep.subr.mxu0 0.0
    %246 = vmatpush1.msra.mxu0 0.0
    %247 = vmatprep.subr.mxu0 0.0
    %248 = vmatpush1.msra.mxu0 0.0
    %249 = vmatprep.subr.mxu0 0.0
    %250 = vmatpush1.msra.mxu0 0.0
    %251 = vmatprep.subr.mxu0 0.0
    %252 = vmatpush1.msra.mxu0 0.0
    %253 = vmatprep.subr.mxu0 0.0
    %254 = vmatpush1.msra.mxu0 0.0
    %255 = vmatprep.subr.mxu0 0.0
    %256 = vmatpush1.msra.mxu0 0.0
    %257 = vmatprep.subr.mxu0 0.0
    %258 = vmatpush1.msra.mxu0 0.0
    %259 = vmatprep.subr.mxu0 0.0
    %260 = vmatpush1.msra.mxu0 0.0
    %261 = vmatprep.subr.mxu0 0.0
    %262 = vmatpush1.msra.mxu0 0.0
    %263 = vmatprep.subr.mxu0 0.0
    %264 = vmatpush1.msra.mxu0 0.0
    %265 = vmatprep.subr.mxu0 0.0
    %266 = vmatpush1.msra.mxu0 0.0
    %267 = vmatprep.mubr.f32.mxu0 0.0
    %268 = vmatmul.mubr.f32.gmra.mrb[0].mxu0 %v179
    %v269 = vpop.f32.mrb[0].mxu0
    %v270 = vadd.f32 %v201, %v269
    %v271 = vpop.f32.mrb[0].mxu0
    %272 = vdwg.mxu0
    %v273 = vsub.f32 0.0, %v270
    %v274 = vmul.f32 %v273, 1.442695
    %v275 = vpow.pop %v274
    %v276 = vadd.f32 %v275, 1.0
    %v277 = vrcp.pop %v276
    %v278 = vmul.f32 1.0, %v277
    %v279 = vld [vmem:[#allocation8] sm:$0xff]
    %v280 = vld [vmem:[#allocation8 + $0x8] sm:$0xff]
    %v281 = vld [vmem:[#allocation8 + $0x10] sm:$0xff]
    %v282 = vld [vmem:[#allocation8 + $0x18] sm:$0xff]
    %v283 = vld [vmem:[#allocation8 + $0x20] sm:$0xff]
    %v284 = vld [vmem:[#allocation8 + $0x28] sm:$0xff]
    %v285 = vld [vmem:[#allocation8 + $0x30] sm:$0xff]
    %v286 = vld [vmem:[#allocation8 + $0x38] sm:$0xff]
    %v287 = vld [vmem:[#allocation8 + $0x40] sm:$0xff]
    %v288 = vld [vmem:[#allocation8 + $0x48] sm:$0xff]
    %v289 = vld [vmem:[#allocation8 + $0x50] sm:$0xff]
    %v290 = vld [vmem:[#allocation8 + $0x58] sm:$0xff]
    %v291 = vld [vmem:[#allocation8 + $0x60] sm:$0xff]
    %v292 = vld [vmem:[#allocation8 + $0x68] sm:$0xff]
    %v293 = vld [vmem:[#allocation8 + $0x70] sm:$0xff]
    %v294 = vld [vmem:[#allocation8 + $0x78] sm:$0xff]
    %v295 = vld [vmem:[%s6] sm:$0x1]
    %v297 = vlaneseq
    %v298 = vshrl.u32 %v297, 7
    %v299 = vsub.s32 0, %v298
    %v300 = vrot.slane %v295, %v299
    %302 = vmatprep.subr.mxu0 0.0
    %303 = vmatpush1.msra.mxu0 %v279
    %304 = vmatprep.subr.mxu0 0.0
    %305 = vmatpush1.msra.mxu0 %v280
    %306 = vmatprep.subr.mxu0 0.0
    %307 = vmatpush1.msra.mxu0 %v281
    %308 = vmatprep.subr.mxu0 0.0
    %309 = vmatpush1.msra.mxu0 %v282
    %310 = vmatprep.subr.mxu0 0.0
    %311 = vmatpush1.msra.mxu0 %v283
    %312 = vmatprep.subr.mxu0 0.0
    %313 = vmatpush1.msra.mxu0 %v284
    %314 = vmatprep.subr.mxu0 0.0
    %315 = vmatpush1.msra.mxu0 %v285
    %316 = vmatprep.subr.mxu0 0.0
    %317 = vmatpush1.msra.mxu0 %v286
    %318 = vmatprep.subr.mxu0 0.0
    %319 = vmatpush1.msra.mxu0 %v287
    %320 = vmatprep.subr.mxu0 0.0
    %321 = vmatpush1.msra.mxu0 %v288
    %322 = vmatprep.subr.mxu0 0.0
    %323 = vmatpush1.msra.mxu0 %v289
    %324 = vmatprep.subr.mxu0 0.0
    %325 = vmatpush1.msra.mxu0 %v290
    %326 = vmatprep.subr.mxu0 0.0
    %327 = vmatpush1.msra.mxu0 %v291
    %328 = vmatprep.subr.mxu0 0.0
    %329 = vmatpush1.msra.mxu0 %v292
    %330 = vmatprep.subr.mxu0 0.0
    %331 = vmatpush1.msra.mxu0 %v293
    %332 = vmatprep.subr.mxu0 0.0
    %333 = vmatpush1.msra.mxu0 %v294
    %334 = vmatprep.subr.mxu0 0.0
    %335 = vmatpush1.msra.mxu0 0.0
    %336 = vmatprep.subr.mxu0 0.0
    %337 = vmatpush1.msra.mxu0 0.0
    %338 = vmatprep.subr.mxu0 0.0
    %339 = vmatpush1.msra.mxu0 0.0
    %340 = vmatprep.subr.mxu0 0.0
    %341 = vmatpush1.msra.mxu0 0.0
    %342 = vmatprep.subr.mxu0 0.0
    %343 = vmatpush1.msra.mxu0 0.0
    %344 = vmatprep.subr.mxu0 0.0
    %345 = vmatpush1.msra.mxu0 0.0
    %346 = vmatprep.subr.mxu0 0.0
    %347 = vmatpush1.msra.mxu0 0.0
    %348 = vmatprep.subr.mxu0 0.0
    %349 = vmatpush1.msra.mxu0 0.0
    %350 = vmatprep.subr.mxu0 0.0
    %351 = vmatpush1.msra.mxu0 0.0
    %352 = vmatprep.subr.mxu0 0.0
    %353 = vmatpush1.msra.mxu0 0.0
    %354 = vmatprep.subr.mxu0 0.0
    %355 = vmatpush1.msra.mxu0 0.0
    %356 = vmatprep.subr.mxu0 0.0
    %357 = vmatpush1.msra.mxu0 0.0
    %358 = vmatprep.subr.mxu0 0.0
    %359 = vmatpush1.msra.mxu0 0.0
    %360 = vmatprep.subr.mxu0 0.0
    %361 = vmatpush1.msra.mxu0 0.0
    %362 = vmatprep.subr.mxu0 0.0
    %363 = vmatpush1.msra.mxu0 0.0
    %364 = vmatprep.subr.mxu0 0.0
    %365 = vmatpush1.msra.mxu0 0.0
    %366 = vmatprep.mubr.f32.mxu0 0.0
    %367 = vmatmul.mubr.f32.gmra.mrb[0].mxu0 %v278
    %v368 = vpop.f32.mrb[0].mxu0
    %v369 = vadd.f32 %v300, %v368
    %v370 = vpop.f32.mrb[0].mxu0
    %371 = vdwg.mxu0
    %372 = vst [vmem:[#allocation10] sm:$0xff] %v369
    // Predicated region
    $region46: #{tpu_custom_call.1} parent=1 // pred_check
      _
    $region47: #{tpu_custom_call.1} parent=1 // pred_check_branch
      %374 = sbr.rel (0) target = $region49
    $region48: #{tpu_custom_call.1} parent=1 // pred_region
      %s376 = ssub.s32 128, 128
      %377 = vsyncadd [#allocation4], %s376
      %s379 = sshll.u32 [#allocation10], 4
      %s380 = int_to_ptr.vmem [resolvable:$true] %s379
      %382 = dma.vmem_to_hbm [thread:$0]  %s380, 128, %s7, [#allocation4]
    $region49: #{tpu_custom_call.1} parent=1 // pred_fallthru
      _
    // Predicated region
    $region50: #{tpu_custom_call.1} parent=1 // pred_check
      _
    $region51: #{tpu_custom_call.1} parent=1 // pred_check_branch
      %384 = sbr.rel (0) target = $region53
    $region52: #{tpu_custom_call.1} parent=1 // pred_region
      %385 = dma.done [#allocation4], 128
    $region53: #{tpu_custom_call.1} parent=1 // pred_fallthru
      _
    %386 = vsyncpa [#allocation3], 1
    %387 = vsyncpa [#allocation6], 1
    %388 = vsyncpa [#allocation9], 1
    %389 = vsyncpa [#allocation4], 1

</llo_original>
